<compile_context>
chip_gen: v5e
topology: v5e:2x2
jax: 0.10.0
libtpu: 0.0.40
codegen_flags: <defaults>
</compile_context>

<pallas_src>
import functools

import numpy as np
import jax
import jax.numpy as jnp
from jax import lax
from jax.experimental import pallas as pl
from jax.experimental.pallas import tpu as pltpu


def _mspushpull_kernel(c_ref, feat_ref, gt_ref, out_ref, *,
                       scale_offsets, scale_lens, batch_tile, c_max_pad,
                       margin_var, margin_dist):
    # c_ref   : SMEM (1,) int32           -- dynamic C (max valid label of gts[0])
    # feat_ref: (Bt, 1, P_total) f32       gt_ref: (Bt, 1, P_total) i16
    # out_ref : (Bt, 1, 128) f32           lanes 0..3 = pull_sum, pull_cnt, push_sum, push_cnt
    P_total = feat_ref.shape[-1]
    c_dyn = c_ref[0]

    # hoisted constants (independent of the batch row)
    inst_ids = (lax.broadcasted_iota(jnp.int32, (c_max_pad, P_total), 0) + 1
                ).astype(gt_ref.dtype)                                  # (c, P)
    ids_row = lax.broadcasted_iota(jnp.int32, (1, c_max_pad), 1) + 1    # (1, c)
    ids_col = lax.broadcasted_iota(jnp.int32, (c_max_pad, 1), 0) + 1    # (c, 1)
    ri = lax.broadcasted_iota(jnp.int32, (c_max_pad, c_max_pad), 0)
    ci = lax.broadcasted_iota(jnp.int32, (c_max_pad, c_max_pad), 1)
    offdiag = (ri != ci).astype(jnp.float32)                            # (c, c)
    lane = lax.broadcasted_iota(jnp.int32, (1, 128), 1)

    # contract the LAST dim of both operands (q @ k.T style, lowers to MXU)
    cdims = (((1,), (1,)), ((), ()))

    for bt in range(batch_tile):
        feat_b = feat_ref[bt]                                           # (1, P) f32
        gt_b = gt_ref[bt]                                               # (1, P) i16

        # one-hot instance mask, built ONCE (all scales, reused by both phases)
        mask = (gt_b == inst_ids).astype(jnp.float32)                   # (c, P)

        # RHS for the masked reductions: row 0 = feat, row 1 = ones (-> sums & counts)
        rhs_full = jnp.concatenate([feat_b, jnp.ones_like(feat_b)], axis=0)   # (2, P)

        # ---- phase 1a: column-form global sums / counts (one MXU pass, all scales)
        sc_col = lax.dot_general(mask, rhs_full, cdims,
                                 preferred_element_type=jnp.float32)    # (c, 2)
        sum_col = sc_col[:, 0:1]                                        # (c, 1)
        cnt_col = sc_col[:, 1:2]                                        # (c, 1)

        # ---- phase 1b: row-form per-scale counts (pull normalization) + totals ----
        sum_row = jnp.zeros((1, c_max_pad), jnp.float32)
        cnt_row = jnp.zeros((1, c_max_pad), jnp.float32)
        cnt_row_scales = []
        for off, plen in zip(scale_offsets, scale_lens):
            m_s = mask[:, off:off + plen]                               # aligned slice
            rhs_s = rhs_full[:, off:off + plen]
            sc_row = lax.dot_general(rhs_s, m_s, cdims,
                                     preferred_element_type=jnp.float32)  # (2, c)
            sum_row = sum_row + sc_row[0:1, :]
            cnt_row = cnt_row + sc_row[1:2, :]
            cnt_row_scales.append(sc_row[1:2, :])                       # (1, c) each

        mean_row = sum_row / jnp.maximum(cnt_row, 1.0)                  # (1, c) f32
        mean_col = sum_col / jnp.maximum(cnt_col, 1.0)                  # (c, 1) f32
        gate_row = jnp.logical_and(cnt_row > 0.0, ids_row <= c_dyn).astype(jnp.float32)
        gate_col = jnp.logical_and(cnt_col > 0.0, ids_col <= c_dyn).astype(jnp.float32)

        # ---- phase 2: pull term (one vectorized pass over pixels per scale) -------
        pull_row = jnp.zeros((1, c_max_pad), jnp.float32)
        for s, (off, plen) in enumerate(zip(scale_offsets, scale_lens)):
            m_s = mask[:, off:off + plen]
            feat_s = feat_b[:, off:off + plen]
            # per-pixel assigned-instance mean via one-hot gather on the MXU
            mu_pix = jnp.dot(mean_row, m_s,
                             preferred_element_type=jnp.float32)        # (1, plen)
            t_s = jnp.square(jnp.maximum(jnp.abs(feat_s - mu_pix) - margin_var, 0.0))
            ps_row = lax.dot_general(t_s, m_s, cdims,
                                     preferred_element_type=jnp.float32)  # (1, c)
            cnt_s = cnt_row_scales[s]
            pull_row = pull_row + jnp.where(
                cnt_s > 0.0, ps_row / jnp.maximum(cnt_s, 1.0), 0.0)

        pull_sum_b = jnp.sum(gate_row * pull_row)
        pull_cnt_b = jnp.sum(gate_row)

        # ---- push term: all ordered pairs at once ---------------------------------
        diff = mean_col - mean_row                                      # (c, c)
        push_mat = jnp.square(jnp.maximum(2.0 * margin_dist - jnp.abs(diff), 0.0))
        pair_gate = gate_col * gate_row * offdiag
        push_sum_b = jnp.sum(push_mat * pair_gate)
        push_cnt_b = jnp.sum(pair_gate)

        out = (jnp.where(lane == 0, pull_sum_b, 0.0)
               + jnp.where(lane == 1, pull_cnt_b, 0.0)
               + jnp.where(lane == 2, push_sum_b, 0.0)
               + jnp.where(lane == 3, push_cnt_b, 0.0))                 # (1, 128)
        out_ref[bt] = out.astype(out_ref.dtype)


def _pick_batch_tile(B, P_total):
    """Batch rows per grid step: amortize per-step overhead for small maps but
    keep the grid length >= 2 so both v7x TensorCores stay busy."""
    bytes_per_row = P_total * (4 + 2)          # f32 feat + i16 gt
    if bytes_per_row > (1 << 20):
        return 1
    best = 1
    for bt in range(1, min(8, B) + 1):
        if B % bt == 0 and (B // bt) >= min(2, B):
            best = bt
    return best


def _vmem_limit_bytes():
    """Per-generation scoped-VMEM budget: v5e/v6e have 128 MiB physical, v7x 64 MiB."""
    try:
        kind = jax.devices()[0].device_kind.lower()
    except Exception:
        kind = ""
    if ("v5" in kind) or ("v6" in kind):
        return 96 * 1024 * 1024
    return 40 * 1024 * 1024                     # v7x / unknown: leave headroom


def ms_push_pull_loss(featmaps, gts, *, var_weight, dist_weight, margin_var,
                      margin_dist, ignore_label, c_max):
    """featmaps / gts: lists (one entry per scale) of [B, C, H, W] arrays.
    `c_max` is a static upper bound on instance labels (< ignore_label)."""
    assert len(featmaps) == len(gts) and len(featmaps) > 0
    assert c_max < ignore_label
    assert ignore_label <= np.iinfo(np.int16).max
    c_max_pad = max(8, int(np.ceil(c_max / 8.0) * 8))
    assert c_max_pad < ignore_label, "c_max_pad must stay below ignore_label"

    B = featmaps[0].shape[0]
    gt_dtype = jnp.int16

    feats, gtsl, offsets, plens = [], [], [], []
    off = 0
    for fm, g in zip(featmaps, gts):
        assert fm.shape == g.shape and fm.shape[0] == B
        p = int(np.prod(fm.shape[1:]))
        p_pad = int(np.ceil(p / 128.0) * 128)        # per-scale padding only
        f2 = jnp.reshape(fm, (B, p)).astype(jnp.float32)
        g2 = jnp.reshape(g, (B, p)).astype(gt_dtype)
        feats.append(jnp.pad(f2, ((0, 0), (0, p_pad - p))))
        gtsl.append(jnp.pad(g2, ((0, 0), (0, p_pad - p)),
                            constant_values=ignore_label))
        offsets.append(off)
        plens.append(p_pad)
        off += p_pad
    P_total = off

    # Host-side guard (concrete inputs only): labels above the static c_max bound
    # would be silently dropped by the kernel's fixed instance dimension.
    max_lbl = None
    try:
        max_lbl = 0
        for g in gts:
            ga = np.asarray(g)
            valid = ga[ga < ignore_label]
            if valid.size:
                max_lbl = max(max_lbl, int(valid.max()))
    except Exception:
        max_lbl = None   # traced inputs: skip host-side check
    if max_lbl is not None:
        assert max_lbl <= c_max, f"gt label {max_lbl} exceeds static c_max={c_max}"

    feat_cat = jnp.concatenate(feats, axis=1)[:, None, :]     # (B, 1, P_total) f32
    gt_cat = jnp.concatenate(gtsl, axis=1)[:, None, :]        # (B, 1, P_total) i16

    # dynamic C = max valid label < ignore_label in the FIRST scale (reference semantics)
    g0 = gtsl[0]
    c_dyn = jnp.max(jnp.where(g0 < ignore_label, g0, gt_dtype(0))).astype(jnp.int32)
    c_dyn = jnp.minimum(c_dyn, jnp.int32(c_max))
    c_arr = c_dyn.reshape(1)

    batch_tile = _pick_batch_tile(B, P_total)

    kernel = functools.partial(
        _mspushpull_kernel,
        scale_offsets=tuple(offsets),
        scale_lens=tuple(plens),
        batch_tile=batch_tile,
        c_max_pad=c_max_pad,
        margin_var=float(margin_var),
        margin_dist=float(margin_dist),
    )

    out = pl.pallas_call(
        kernel,
        out_shape=jax.ShapeDtypeStruct((B, 1, 128), jnp.float32),
        grid_spec=pltpu.PrefetchScalarGridSpec(
            num_scalar_prefetch=1,
            grid=(B // batch_tile,),
            in_specs=[
                pl.BlockSpec((batch_tile, 1, P_total), lambda b, c: (b, 0, 0)),
                pl.BlockSpec((batch_tile, 1, P_total), lambda b, c: (b, 0, 0)),
            ],
            out_specs=pl.BlockSpec((batch_tile, 1, 128), lambda b, c: (b, 0, 0)),
        ),
        compiler_params=pltpu.CompilerParams(
            dimension_semantics=("parallel",),
            vmem_limit_bytes=_vmem_limit_bytes(),
        ),
    )(c_arr, feat_cat, gt_cat)

    pull_sum = jnp.sum(out[:, 0, 0])
    pull_cnt = jnp.sum(out[:, 0, 1])
    push_sum = jnp.sum(out[:, 0, 2])
    push_cnt = jnp.sum(out[:, 0, 3])

    pull_loss = jnp.where(pull_cnt > 0, pull_sum / jnp.maximum(pull_cnt, 1.0), 0.0) * var_weight
    push_loss = jnp.where(push_cnt > 0, push_sum / jnp.maximum(push_cnt, 1.0), 0.0) * dist_weight
    return push_loss + pull_loss


def _reference_loss(featmaps, gts, *, var_weight, dist_weight, margin_var,
                    margin_dist, ignore_label):
    """Pure numpy transcription of MSPushPullLoss.forward (for validation)."""
    fms = [np.asarray(f, dtype=np.float64) for f in featmaps]
    gs = [np.asarray(g) for g in gts]
    g0 = gs[0]
    valid = g0[g0 < ignore_label]
    C = int(valid.max()) if valid.size else 0
    B = fms[0].shape[0]
    pulls, pushes = [], []
    for b in range(B):
        bfeats = [fm[b] for fm in fms]
        bgts = [g[b] for g in gs]
        means = {}
        for i in range(1, C + 1):
            masks = [bg == i for bg in bgts]
            vals = [bf[m] for bf, m in zip(bfeats, masks) if m.sum() > 0]
            if len(vals) == 0:
                continue
            mean = np.concatenate(vals).mean()
            means[i] = mean
            item = 0.0
            for bf, m in zip(bfeats, masks):
                if m.sum() == 0:
                    continue
                item += (np.maximum(np.abs(bf[m] - mean) - margin_var, 0.0) ** 2).mean()
            pulls.append(item)
        for i in range(1, C + 1):
            for j in range(1, C + 1):
                if i == j or i not in means or j not in means:
                    continue
                pushes.append(np.maximum(2.0 * margin_dist - abs(means[i] - means[j]), 0.0) ** 2)
    pull = (float(np.mean(pulls)) * var_weight) if pulls else 0.0
    push = (float(np.mean(pushes)) * dist_weight) if pushes else 0.0
    return push + pull


if __name__ == "__main__":
    # Module hyperparameters (no learnable weights in this nn.Module).
    var_weight, dist_weight = 1.0, 1.0
    margin_var, margin_dist = 0.5, 3.0
    ignore_label = 255
    c_max = 3   # labels used: {0 (bg), 1, 2, 3} plus ignore_label pixels

    key = jax.random.PRNGKey(0)
    k1, k2, k3, k4 = jax.random.split(key, 4)

    B = 2
    # two scales, single-channel embeddings (as the module expects)
    fm0 = jax.random.normal(k1, (B, 1, 16, 16), dtype=jnp.float32)
    fm1 = jax.random.normal(k2, (B, 1, 8, 8), dtype=jnp.float32)
    raw0 = jax.random.randint(k3, (B, 1, 16, 16), 0, c_max + 2)   # 0..4
    raw1 = jax.random.randint(k4, (B, 1, 8, 8), 0, c_max + 2)
    gt0 = jnp.where(raw0 > c_max, ignore_label, raw0).astype(jnp.int32)
    gt1 = jnp.where(raw1 > c_max, ignore_label, raw1).astype(jnp.int32)

    featmaps = [fm0, fm1]
    gts = [gt0, gt1]

    loss = ms_push_pull_loss(
        featmaps, gts,
        var_weight=var_weight, dist_weight=dist_weight,
        margin_var=margin_var, margin_dist=margin_dist,
        ignore_label=ignore_label, c_max=c_max,
    )
    loss = jax.block_until_ready(loss)

    ref = _reference_loss(
        [np.asarray(fm0), np.asarray(fm1)], [np.asarray(gt0), np.asarray(gt1)],
        var_weight=var_weight, dist_weight=dist_weight,
        margin_var=margin_var, margin_dist=margin_dist,
        ignore_label=ignore_label,
    )
    assert abs(float(loss) - ref) < 1e-3 * max(1.0, abs(ref)), (float(loss), ref)

    print("KERNEL_OK")
</pallas_src>

<mosaic_0001>
module attributes {stable_mosaic.version = 11 : i64} {
  func.func @_mspushpull_kernel(%arg0: i32, %arg1: memref<1xi32, #tpu.memory_space<smem>>, %arg2: memref<1x1x384xf32, #tpu.memory_space<vmem>>, %arg3: memref<1x1x384xi16, #tpu.memory_space<vmem>>, %arg4: memref<1x1x128xf32, #tpu.memory_space<vmem>>) attributes {dimension_semantics = [#tpu.dimension_semantics<parallel>], iteration_bounds = array<i64: 2>, scalar_prefetch = 1 : i64, scratch_operands = 0 : i64, tpu.core_type = #tpu.core_type<tc>, window_params = [{transform_indices = @transform_0, window_bounds = array<i64: 1, 1, 384>}, {transform_indices = @transform_1, window_bounds = array<i64: 1, 1, 384>}, {transform_indices = @transform_2, window_bounds = array<i64: 1, 1, 128>}]} {
    %c0 = arith.constant 0 : index
    %0 = memref.load %arg1[%c0] : memref<1xi32, #tpu.memory_space<smem>>
    %1 = tpu.iota {dimensions = array<i32: 0>} : vector<8x384xi32>
    %c1_i32 = arith.constant 1 : i32
    %2 = vector.broadcast %c1_i32 : i32 to vector<8x384xi32>
    %3 = arith.addi %1, %2 : vector<8x384xi32>
    %4 = arith.trunci %3 : vector<8x384xi32> to vector<8x384xi16>
    %5 = tpu.iota {dimensions = array<i32: 1>} : vector<1x8xi32>
    %c1_i32_0 = arith.constant 1 : i32
    %6 = vector.broadcast %c1_i32_0 : i32 to vector<1x8xi32>
    %7 = arith.addi %5, %6 : vector<1x8xi32>
    %8 = tpu.iota {dimensions = array<i32: 0>} : vector<8x1xi32>
    %c1_i32_1 = arith.constant 1 : i32
    %9 = vector.broadcast %c1_i32_1 : i32 to vector<8x1xi32>
    %10 = arith.addi %8, %9 : vector<8x1xi32>
    %11 = tpu.iota {dimensions = array<i32: 0>} : vector<8x8xi32>
    %12 = tpu.iota {dimensions = array<i32: 1>} : vector<8x8xi32>
    %13 = arith.cmpi ne, %11, %12 : vector<8x8xi32>
    %14 = arith.extui %13 : vector<8x8xi1> to vector<8x8xi32>
    %15 = arith.sitofp %14 : vector<8x8xi32> to vector<8x8xf32>
    %16 = tpu.iota {dimensions = array<i32: 1>} : vector<1x128xi32>
    %c0_2 = arith.constant 0 : index
    %c0_3 = arith.constant 0 : index
    %c0_4 = arith.constant 0 : index
    %17 = vector.load %arg2[%c0_2, %c0_3, %c0_4] : memref<1x1x384xf32, #tpu.memory_space<vmem>>, vector<1x1x384xf32>
    %18 = vector.shape_cast %17 : vector<1x1x384xf32> to vector<1x384xf32>
    %c0_5 = arith.constant 0 : index
    %c0_6 = arith.constant 0 : index
    %c0_7 = arith.constant 0 : index
    %19 = vector.load %arg3[%c0_5, %c0_6, %c0_7] : memref<1x1x384xi16, #tpu.memory_space<vmem>>, vector<1x1x384xi16>
    %20 = vector.shape_cast %19 : vector<1x1x384xi16> to vector<1x384xi16>
    %21 = vector.broadcast %20 : vector<1x384xi16> to vector<8x384xi16>
    %22 = arith.cmpi eq, %21, %4 : vector<8x384xi16>
    %23 = arith.extui %22 : vector<8x384xi1> to vector<8x384xi32>
    %24 = arith.sitofp %23 : vector<8x384xi32> to vector<8x384xf32>
    %cst = arith.constant 1.000000e+00 : f32
    %25 = vector.broadcast %cst : f32 to vector<1x384xf32>
    %26 = tpu.concatenate %18, %25 in 0 : vector<1x384xf32>, vector<1x384xf32> -> vector<2x384xf32>
    %cst_8 = arith.constant dense<0.000000e+00> : vector<8x2xf32>
    %27 = tpu.matmul %24, %26, %cst_8 {dimension_numbers = #tpu.dot_dimension_numbers<[1], [1], [0], [0], [0, 0, 1, 0], [], []>} : vector<8x384xf32>, vector<2x384xf32>, vector<8x2xf32> -> vector<8x2xf32>
    %28 = vector.extract_strided_slice %27 {offsets = [0, 0], sizes = [8, 1], strides = [1, 1]} : vector<8x2xf32> to vector<8x1xf32>
    %29 = vector.extract_strided_slice %27 {offsets = [0, 1], sizes = [8, 1], strides = [1, 1]} : vector<8x2xf32> to vector<8x1xf32>
    %cst_9 = arith.constant 0.000000e+00 : f32
    %30 = vector.broadcast %cst_9 : f32 to vector<1x8xf32>
    %cst_10 = arith.constant 0.000000e+00 : f32
    %31 = vector.broadcast %cst_10 : f32 to vector<1x8xf32>
    %32 = vector.extract_strided_slice %24 {offsets = [0, 0], sizes = [8, 256], strides = [1, 1]} : vector<8x384xf32> to vector<8x256xf32>
    %33 = vector.extract_strided_slice %26 {offsets = [0, 0], sizes = [2, 256], strides = [1, 1]} : vector<2x384xf32> to vector<2x256xf32>
    %cst_11 = arith.constant dense<0.000000e+00> : vector<2x8xf32>
    %34 = tpu.matmul %33, %32, %cst_11 {dimension_numbers = #tpu.dot_dimension_numbers<[1], [1], [0], [0], [0, 0, 1, 0], [], []>} : vector<2x256xf32>, vector<8x256xf32>, vector<2x8xf32> -> vector<2x8xf32>
    %35 = vector.extract_strided_slice %34 {offsets = [0, 0], sizes = [1, 8], strides = [1, 1]} : vector<2x8xf32> to vector<1x8xf32>
    %36 = arith.addf %30, %35 : vector<1x8xf32>
    %37 = vector.extract_strided_slice %34 {offsets = [1, 0], sizes = [1, 8], strides = [1, 1]} : vector<2x8xf32> to vector<1x8xf32>
    %38 = arith.addf %31, %37 : vector<1x8xf32>
    %39 = vector.extract_strided_slice %34 {offsets = [1, 0], sizes = [1, 8], strides = [1, 1]} : vector<2x8xf32> to vector<1x8xf32>
    %40 = vector.extract_strided_slice %24 {offsets = [0, 256], sizes = [8, 128], strides = [1, 1]} : vector<8x384xf32> to vector<8x128xf32>
    %41 = vector.extract_strided_slice %26 {offsets = [0, 256], sizes = [2, 128], strides = [1, 1]} : vector<2x384xf32> to vector<2x128xf32>
    %cst_12 = arith.constant dense<0.000000e+00> : vector<2x8xf32>
    %42 = tpu.matmul %41, %40, %cst_12 {dimension_numbers = #tpu.dot_dimension_numbers<[1], [1], [0], [0], [0, 0, 1, 0], [], []>} : vector<2x128xf32>, vector<8x128xf32>, vector<2x8xf32> -> vector<2x8xf32>
    %43 = vector.extract_strided_slice %42 {offsets = [0, 0], sizes = [1, 8], strides = [1, 1]} : vector<2x8xf32> to vector<1x8xf32>
    %44 = arith.addf %36, %43 : vector<1x8xf32>
    %45 = vector.extract_strided_slice %42 {offsets = [1, 0], sizes = [1, 8], strides = [1, 1]} : vector<2x8xf32> to vector<1x8xf32>
    %46 = arith.addf %38, %45 : vector<1x8xf32>
    %47 = vector.extract_strided_slice %42 {offsets = [1, 0], sizes = [1, 8], strides = [1, 1]} : vector<2x8xf32> to vector<1x8xf32>
    %cst_13 = arith.constant 1.000000e+00 : f32
    %48 = vector.broadcast %cst_13 : f32 to vector<1x8xf32>
    %49 = arith.maximumf %46, %48 : vector<1x8xf32>
    %50 = arith.divf %44, %49 : vector<1x8xf32>
    %cst_14 = arith.constant 1.000000e+00 : f32
    %51 = vector.broadcast %cst_14 : f32 to vector<8x1xf32>
    %52 = arith.maximumf %29, %51 : vector<8x1xf32>
    %53 = arith.divf %28, %52 : vector<8x1xf32>
    %cst_15 = arith.constant 0.000000e+00 : f32
    %54 = vector.broadcast %cst_15 : f32 to vector<1x8xf32>
    %55 = arith.cmpf ogt, %46, %54 : vector<1x8xf32>
    %56 = vector.broadcast %0 : i32 to vector<1x8xi32>
    %57 = arith.cmpi sle, %7, %56 : vector<1x8xi32>
    %58 = arith.andi %55, %57 : vector<1x8xi1>
    %59 = arith.extui %58 : vector<1x8xi1> to vector<1x8xi32>
    %60 = arith.sitofp %59 : vector<1x8xi32> to vector<1x8xf32>
    %cst_16 = arith.constant 0.000000e+00 : f32
    %61 = vector.broadcast %cst_16 : f32 to vector<8x1xf32>
    %62 = arith.cmpf ogt, %29, %61 : vector<8x1xf32>
    %63 = vector.broadcast %0 : i32 to vector<8x1xi32>
    %64 = arith.cmpi sle, %10, %63 : vector<8x1xi32>
    %65 = arith.andi %62, %64 : vector<8x1xi1>
    %66 = arith.extui %65 : vector<8x1xi1> to vector<8x1xi32>
    %67 = arith.sitofp %66 : vector<8x1xi32> to vector<8x1xf32>
    %cst_17 = arith.constant 0.000000e+00 : f32
    %68 = vector.broadcast %cst_17 : f32 to vector<1x8xf32>
    %69 = vector.extract_strided_slice %24 {offsets = [0, 0], sizes = [8, 256], strides = [1, 1]} : vector<8x384xf32> to vector<8x256xf32>
    %70 = vector.extract_strided_slice %18 {offsets = [0, 0], sizes = [1, 256], strides = [1, 1]} : vector<1x384xf32> to vector<1x256xf32>
    %cst_18 = arith.constant dense<0.000000e+00> : vector<1x256xf32>
    %71 = tpu.matmul %50, %69, %cst_18 {dimension_numbers = #tpu.dot_dimension_numbers<[1], [0], [0], [1], [0, 0, 1, 1], [], []>} : vector<1x8xf32>, vector<8x256xf32>, vector<1x256xf32> -> vector<1x256xf32>
    %72 = arith.subf %70, %71 : vector<1x256xf32>
    %73 = math.absf %72 : vector<1x256xf32>
    %cst_19 = arith.constant 5.000000e-01 : f32
    %74 = vector.broadcast %cst_19 : f32 to vector<1x256xf32>
    %75 = arith.subf %73, %74 : vector<1x256xf32>
    %cst_20 = arith.constant 0.000000e+00 : f32
    %76 = vector.broadcast %cst_20 : f32 to vector<1x256xf32>
    %77 = arith.maximumf %75, %76 : vector<1x256xf32>
    %78 = arith.mulf %77, %77 : vector<1x256xf32>
    %cst_21 = arith.constant dense<0.000000e+00> : vector<1x8xf32>
    %79 = tpu.matmul %78, %69, %cst_21 {dimension_numbers = #tpu.dot_dimension_numbers<[1], [1], [0], [0], [0, 0, 1, 0], [], []>} : vector<1x256xf32>, vector<8x256xf32>, vector<1x8xf32> -> vector<1x8xf32>
    %cst_22 = arith.constant 0.000000e+00 : f32
    %80 = vector.broadcast %cst_22 : f32 to vector<1x8xf32>
    %81 = arith.cmpf ogt, %39, %80 : vector<1x8xf32>
    %cst_23 = arith.constant 1.000000e+00 : f32
    %82 = vector.broadcast %cst_23 : f32 to vector<1x8xf32>
    %83 = arith.maximumf %39, %82 : vector<1x8xf32>
    %84 = arith.divf %79, %83 : vector<1x8xf32>
    %cst_24 = arith.constant 0.000000e+00 : f32
    %85 = vector.broadcast %cst_24 : f32 to vector<1x8xf32>
    %86 = arith.select %81, %84, %85 : vector<1x8xi1>, vector<1x8xf32>
    %87 = arith.addf %68, %86 : vector<1x8xf32>
    %88 = vector.extract_strided_slice %24 {offsets = [0, 256], sizes = [8, 128], strides = [1, 1]} : vector<8x384xf32> to vector<8x128xf32>
    %89 = vector.extract_strided_slice %18 {offsets = [0, 256], sizes = [1, 128], strides = [1, 1]} : vector<1x384xf32> to vector<1x128xf32>
    %cst_25 = arith.constant dense<0.000000e+00> : vector<1x128xf32>
    %90 = tpu.matmul %50, %88, %cst_25 {dimension_numbers = #tpu.dot_dimension_numbers<[1], [0], [0], [1], [0, 0, 1, 1], [], []>} : vector<1x8xf32>, vector<8x128xf32>, vector<1x128xf32> -> vector<1x128xf32>
    %91 = arith.subf %89, %90 : vector<1x128xf32>
    %92 = math.absf %91 : vector<1x128xf32>
    %cst_26 = arith.constant 5.000000e-01 : f32
    %93 = vector.broadcast %cst_26 : f32 to vector<1x128xf32>
    %94 = arith.subf %92, %93 : vector<1x128xf32>
    %cst_27 = arith.constant 0.000000e+00 : f32
    %95 = vector.broadcast %cst_27 : f32 to vector<1x128xf32>
    %96 = arith.maximumf %94, %95 : vector<1x128xf32>
    %97 = arith.mulf %96, %96 : vector<1x128xf32>
    %cst_28 = arith.constant dense<0.000000e+00> : vector<1x8xf32>
    %98 = tpu.matmul %97, %88, %cst_28 {dimension_numbers = #tpu.dot_dimension_numbers<[1], [1], [0], [0], [0, 0, 1, 0], [], []>} : vector<1x128xf32>, vector<8x128xf32>, vector<1x8xf32> -> vector<1x8xf32>
    %cst_29 = arith.constant 0.000000e+00 : f32
    %99 = vector.broadcast %cst_29 : f32 to vector<1x8xf32>
    %100 = arith.cmpf ogt, %47, %99 : vector<1x8xf32>
    %cst_30 = arith.constant 1.000000e+00 : f32
    %101 = vector.broadcast %cst_30 : f32 to vector<1x8xf32>
    %102 = arith.maximumf %47, %101 : vector<1x8xf32>
    %103 = arith.divf %98, %102 : vector<1x8xf32>
    %cst_31 = arith.constant 0.000000e+00 : f32
    %104 = vector.broadcast %cst_31 : f32 to vector<1x8xf32>
    %105 = arith.select %100, %103, %104 : vector<1x8xi1>, vector<1x8xf32>
    %106 = arith.addf %87, %105 : vector<1x8xf32>
    %107 = arith.mulf %60, %106 : vector<1x8xf32>
    %108 = vector.shape_cast %107 : vector<1x8xf32> to vector<1x1x8xf32>
    %cst_32 = arith.constant dense<0.000000e+00> : vector<1xf32>
    %109 = vector.multi_reduction <add>, %108, %cst_32 [1, 2] : vector<1x1x8xf32> to vector<1xf32>
    %110 = vector.shape_cast %109 : vector<1xf32> to vector<1x1x1xf32>
    %111 = vector.extract %110[0, 0, 0] : f32 from vector<1x1x1xf32>
    %112 = vector.shape_cast %60 : vector<1x8xf32> to vector<1x1x8xf32>
    %cst_33 = arith.constant dense<0.000000e+00> : vector<1xf32>
    %113 = vector.multi_reduction <add>, %112, %cst_33 [1, 2] : vector<1x1x8xf32> to vector<1xf32>
    %114 = vector.shape_cast %113 : vector<1xf32> to vector<1x1x1xf32>
    %115 = vector.extract %114[0, 0, 0] : f32 from vector<1x1x1xf32>
    %116 = vector.broadcast %53 : vector<8x1xf32> to vector<8x8xf32>
    %117 = vector.broadcast %50 : vector<1x8xf32> to vector<8x8xf32>
    %118 = arith.subf %116, %117 : vector<8x8xf32>
    %119 = math.absf %118 : vector<8x8xf32>
    %cst_34 = arith.constant 6.000000e+00 : f32
    %120 = vector.broadcast %cst_34 : f32 to vector<8x8xf32>
    %121 = arith.subf %120, %119 : vector<8x8xf32>
    %cst_35 = arith.constant 0.000000e+00 : f32
    %122 = vector.broadcast %cst_35 : f32 to vector<8x8xf32>
    %123 = arith.maximumf %121, %122 : vector<8x8xf32>
    %124 = arith.mulf %123, %123 : vector<8x8xf32>
    %125 = vector.broadcast %67 : vector<8x1xf32> to vector<8x8xf32>
    %126 = vector.broadcast %60 : vector<1x8xf32> to vector<8x8xf32>
    %127 = arith.mulf %125, %126 : vector<8x8xf32>
    %128 = arith.mulf %127, %15 : vector<8x8xf32>
    %129 = arith.mulf %124, %128 : vector<8x8xf32>
    %130 = vector.shape_cast %129 : vector<8x8xf32> to vector<1x8x8xf32>
    %cst_36 = arith.constant dense<0.000000e+00> : vector<1xf32>
    %131 = vector.multi_reduction <add>, %130, %cst_36 [1, 2] : vector<1x8x8xf32> to vector<1xf32>
    %132 = vector.shape_cast %131 : vector<1xf32> to vector<1x1x1xf32>
    %133 = vector.extract %132[0, 0, 0] : f32 from vector<1x1x1xf32>
    %134 = vector.shape_cast %128 : vector<8x8xf32> to vector<1x8x8xf32>
    %cst_37 = arith.constant dense<0.000000e+00> : vector<1xf32>
    %135 = vector.multi_reduction <add>, %134, %cst_37 [1, 2] : vector<1x8x8xf32> to vector<1xf32>
    %136 = vector.shape_cast %135 : vector<1xf32> to vector<1x1x1xf32>
    %137 = vector.extract %136[0, 0, 0] : f32 from vector<1x1x1xf32>
    %c0_i32 = arith.constant 0 : i32
    %138 = vector.broadcast %c0_i32 : i32 to vector<1x128xi32>
    %139 = arith.cmpi eq, %16, %138 : vector<1x128xi32>
    %cst_38 = arith.constant 0.000000e+00 : f32
    %140 = vector.broadcast %111 : f32 to vector<1x128xf32>
    %141 = vector.broadcast %cst_38 : f32 to vector<1x128xf32>
    %142 = arith.select %139, %140, %141 : vector<1x128xi1>, vector<1x128xf32>
    %c1_i32_39 = arith.constant 1 : i32
    %143 = vector.broadcast %c1_i32_39 : i32 to vector<1x128xi32>
    %144 = arith.cmpi eq, %16, %143 : vector<1x128xi32>
    %cst_40 = arith.constant 0.000000e+00 : f32
    %145 = vector.broadcast %115 : f32 to vector<1x128xf32>
    %146 = vector.broadcast %cst_40 : f32 to vector<1x128xf32>
    %147 = arith.select %144, %145, %146 : vector<1x128xi1>, vector<1x128xf32>
    %148 = arith.addf %142, %147 : vector<1x128xf32>
    %c2_i32 = arith.constant 2 : i32
    %149 = vector.broadcast %c2_i32 : i32 to vector<1x128xi32>
    %150 = arith.cmpi eq, %16, %149 : vector<1x128xi32>
    %cst_41 = arith.constant 0.000000e+00 : f32
    %151 = vector.broadcast %133 : f32 to vector<1x128xf32>
    %152 = vector.broadcast %cst_41 : f32 to vector<1x128xf32>
    %153 = arith.select %150, %151, %152 : vector<1x128xi1>, vector<1x128xf32>
    %154 = arith.addf %148, %153 : vector<1x128xf32>
    %c3_i32 = arith.constant 3 : i32
    %155 = vector.broadcast %c3_i32 : i32 to vector<1x128xi32>
    %156 = arith.cmpi eq, %16, %155 : vector<1x128xi32>
    %cst_42 = arith.constant 0.000000e+00 : f32
    %157 = vector.broadcast %137 : f32 to vector<1x128xf32>
    %158 = vector.broadcast %cst_42 : f32 to vector<1x128xf32>
    %159 = arith.select %156, %157, %158 : vector<1x128xi1>, vector<1x128xf32>
    %160 = arith.addf %154, %159 : vector<1x128xf32>
    %c0_43 = arith.constant 0 : index
    %c0_44 = arith.constant 0 : index
    %c0_45 = arith.constant 0 : index
    %161 = vector.load %arg4[%c0_43, %c0_44, %c0_45] : memref<1x1x128xf32, #tpu.memory_space<vmem>>, vector<1x1x128xf32>
    %162 = vector.shape_cast %161 : vector<1x1x128xf32> to vector<1x128xf32>
    %163 = vector.shape_cast %160 : vector<1x128xf32> to vector<1x1x128xf32>
    tpu.vector_store %arg4[%c0_43, %c0_44, %c0_45], %163 {strides = array<i32>} : memref<1x1x128xf32, #tpu.memory_space<vmem>>, vector<1x1x128xf32>,
    return
  }
  func.func @transform_0(%arg0: i32, %arg1: memref<1xi32, #tpu.memory_space<smem>>) -> (i32, i32, i32) {
    %c0_i32 = arith.constant 0 : i32
    %c0_i32_0 = arith.constant 0 : i32
    %c0_i32_1 = arith.constant 0 : i32
    return %arg0, %c0_i32, %c0_i32_0 : i32, i32, i32
  }
  func.func @transform_1(%arg0: i32, %arg1: memref<1xi32, #tpu.memory_space<smem>>) -> (i32, i32, i32) {
    %c0_i32 = arith.constant 0 : i32
    %c0_i32_0 = arith.constant 0 : i32
    %c0_i32_1 = arith.constant 0 : i32
    return %arg0, %c0_i32, %c0_i32_0 : i32, i32, i32
  }
  func.func @transform_2(%arg0: i32, %arg1: memref<1xi32, #tpu.memory_space<smem>>) -> (i32, i32, i32) {
    %c0_i32 = arith.constant 0 : i32
    %c0_i32_0 = arith.constant 0 : i32
    %c0_i32_1 = arith.constant 0 : i32
    return %arg0, %c0_i32, %c0_i32_0 : i32, i32, i32
  }
}

</mosaic_0001>

<llo_original>
// kernel: tpu_custom_call.1
$region0: #{tpu_custom_call.1}
  #allocation0 [shape = 'u32[]', space=smem, size = 0x4, offset = 0x4, fixed_abs, tag = 'smem constant byte address 0x4 - core index']
  #allocation1 [shape = 'u32[72,128]{1,0:T(1,128)}', space=vmem, size = 0x9000, scoped, tag = 'internal scratch']
  #allocation2 [shape = 's32[1]{0}', space=sflag, size = 0x4, scoped, tag = 'scoped memory for tpu_custom_call.1']
  #allocation3 [shape = 's32[1]{0:T(128)S(6)}', space=smem, size = 0x200, scoped, tag = 'prefetched SMEM operand 0']
  %s0 = inlined_call_operand.<no memory space> [shape: s32[1], index: 0, kind: input, shape index: {}]
  %s1 = inlined_call_operand.vmem [shape: f32[2,1,384], index: 1, kind: input, shape index: {}]
  %s2 = inlined_call_operand.vmem [shape: s16[2,1,384], index: 2, kind: input, shape index: {}]
  %s3 = inlined_call_operand.hbm [shape: f32[2,1,128], index: 3, kind: output, shape index: {}]
  %s4 = sld [smem:[#allocation0]]
  $region41: #{tpu_custom_call.1} parent=0
    _
  %s6 = ssub.s32 1, %s4
  %s7 = scalar_select 0, %s6, %s4
  %8 = sst [smem:[#allocation3]] %s0
  $region1: #{tpu_custom_call.1} parent=0
    #allocation4 [shape = 'u8[1024]{0}', space=vmem, size = 0x400, scoped, tag = 'output window, operand 0']
    #allocation5 [shape = 's32[2]{0}', space=sflag, size = 0x8, scoped, tag = 'scoped memory for tpu_custom_call.1']
    %9 = vsyncpa [#allocation5], 0
    %s10 = scalar_lea.sflag [#allocation5], 1
    %11 = vsyncpa %s10, 0
    loop: start=0, step=1, limit=4
    $region2: #{tpu_custom_call.1} parent=1 // loop_pre_header
      _
    $region3: #{tpu_custom_call.1} parent=1 // loop_header
      %s13 = sphi 0, %s17
      %p14 = scmp.ge.s32.totalorder %s13, 4
      %s23 = sphi 0, %s25
      %s26 = sphi 0, %s23
      %s27 = sphi 0, %s26
      %s43 = sphi 0, %s27
      %s49 = sphi 0, %s51
      %s52 = sphi 0, %s49
      %s53 = sphi 0, %s52
      %s69 = sphi 0, %s53
      %s75 = sphi 0, %s77
      %s78 = sphi 0, %s75
      %s79 = sphi 0, %s78
      %s95 = sphi 0, %s79
    $region4: #{tpu_custom_call.1} parent=1 // loop_header_branch
      %16 = sbr.rel (%p14) target = $region8
    $region5: #{tpu_custom_call.1} parent=1 // loop_body
      %s18 = ssub.s32 %s13, 1
      %s19 = ssub.s32 %s13, 2
      %s20 = sadd.s32 %s13, 1
      %s21 = ssub.s32 %s13, %s20
      %p22 = scmp.eq.s32.totalorder %s21, 0
      %s24 = sadd.s32 %s23, 1
      %s25 = scalar_select %p22, %s23, %s24
      %p28 = pneg %p22
      %p29 = scmp.eq.s32.totalorder %s13, 1
      %p30 = por %p28, %p29
      %p31 = scmp.ne.s32.totalorder %s23, %s26
      %p32 = scmp.eq.s32.totalorder %s13, 0
      %p33 = por %p31, %p32
      %p34 = scmp.ne.s32.totalorder %s23, %s26
      %p35 = scmp.eq.s32.totalorder %s18, 1
      %p36 = por %p34, %p35
      %p37 = scmp.ne.s32.totalorder %s26, %s27
      %p38 = scmp.eq.s32.totalorder %s18, 0
      %p39 = por %p37, %p38
      %p40 = scmp.ne.s32.totalorder %s26, %s27
      %p41 = scmp.eq.s32.totalorder %s19, 1
      %p42 = por %p40, %p41
      %p44 = scmp.ne.s32.totalorder %s27, %s43
      %p45 = scmp.eq.s32.totalorder %s19, 0
      %p46 = por %p44, %p45
      %s47 = ssub.s32 %s13, %s20
      %p48 = scmp.eq.s32.totalorder %s47, 0
      %s50 = sadd.s32 %s49, 1
      %s51 = scalar_select %p48, %s49, %s50
      %p54 = pneg %p48
      %p55 = scmp.eq.s32.totalorder %s13, 1
      %p56 = por %p54, %p55
      %p57 = scmp.ne.s32.totalorder %s49, %s52
      %p58 = scmp.eq.s32.totalorder %s13, 0
      %p59 = por %p57, %p58
      %p60 = scmp.ne.s32.totalorder %s49, %s52
      %p61 = scmp.eq.s32.totalorder %s18, 1
      %p62 = por %p60, %p61
      %p63 = scmp.ne.s32.totalorder %s52, %s53
      %p64 = scmp.eq.s32.totalorder %s18, 0
      %p65 = por %p63, %p64
      %p66 = scmp.ne.s32.totalorder %s52, %s53
      %p67 = scmp.eq.s32.totalorder %s19, 1
      %p68 = por %p66, %p67
      %p70 = scmp.ne.s32.totalorder %s53, %s69
      %p71 = scmp.eq.s32.totalorder %s19, 0
      %p72 = por %p70, %p71
      %s73 = ssub.s32 %s13, %s20
      %p74 = scmp.eq.s32.totalorder %s73, 0
      %s76 = sadd.s32 %s75, 1
      %s77 = scalar_select %p74, %s75, %s76
      %p80 = pneg %p74
      %p81 = scmp.eq.s32.totalorder %s13, 1
      %p82 = por %p80, %p81
      %p83 = scmp.ne.s32.totalorder %s75, %s78
      %p84 = scmp.eq.s32.totalorder %s13, 0
      %p85 = por %p83, %p84
      %p86 = scmp.ne.s32.totalorder %s75, %s78
      %p87 = scmp.eq.s32.totalorder %s18, 1
      %p88 = por %p86, %p87
      %p89 = scmp.ne.s32.totalorder %s78, %s79
      %p90 = scmp.eq.s32.totalorder %s18, 0
      %p91 = por %p89, %p90
      %p92 = scmp.ne.s32.totalorder %s78, %s79
      %p93 = scmp.eq.s32.totalorder %s19, 1
      %p94 = por %p92, %p93
      %p96 = scmp.ne.s32.totalorder %s79, %s95
      %p97 = scmp.eq.s32.totalorder %s19, 0
      %p98 = por %p96, %p97
      %p99 = scmp.le.s32.totalorder 1, %s13
      %p100 = scmp.lt.s32.totalorder %s13, 3
      %p101 = pnand %p99, %p100
      %p102 = pneg %p101
      // Predicated region
      $region9: #{tpu_custom_call.1} parent=5 // pred_check
        _
      $region10: #{tpu_custom_call.1} parent=5 // pred_check_branch
        %104 = sbr.rel (%p101) target = $region12
      $region11: #{tpu_custom_call.1} parent=5 // pred_region
        %s105 = ssub.s32 %s13, 1
      $region12: #{tpu_custom_call.1} parent=5 // pred_fallthru
        _
      %p106 = scmp.lt.s32.totalorder %s13, 2
      // Predicated region
      $region13: #{tpu_custom_call.1} parent=5 // pred_check
        %p107 = pneg %p106
      $region14: #{tpu_custom_call.1} parent=5 // pred_check_branch
        %109 = sbr.rel (%p107) target = $region16
      $region15: #{tpu_custom_call.1} parent=5 // pred_region
        // Predicated region
        $region17: #{tpu_custom_call.1} parent=15 // pred_check
          %p110 = pneg %p33
        $region18: #{tpu_custom_call.1} parent=15 // pred_check_branch
          %112 = sbr.rel (%p110) target = $region20
        $region19: #{tpu_custom_call.1} parent=15 // pred_region
          %p113 = scmp.lt.s32.totalorder %s13, 1
          %s114 = scalar_select %p113, %s13, 1
          %s115 = smul.addr %s114, 3
          %s116 = scalar_lea.vmem %s1, %s115
        $region20: #{tpu_custom_call.1} parent=15 // pred_fallthru
          _
        // Predicated region
        $region21: #{tpu_custom_call.1} parent=15 // pred_check
          %p117 = pneg %p59
        $region22: #{tpu_custom_call.1} parent=15 // pred_check_branch
          %119 = sbr.rel (%p117) target = $region24
        $region23: #{tpu_custom_call.1} parent=15 // pred_region
          %p120 = scmp.lt.s32.totalorder %s13, 1
          %s121 = scalar_select %p120, %s13, 1
          %s122 = smul.addr %s121, 3
          %s123 = scalar_lea.vmem %s2, %s122
        $region24: #{tpu_custom_call.1} parent=15 // pred_fallthru
          _
      $region16: #{tpu_custom_call.1} parent=5 // pred_fallthru
        _
      %p124 = scmp.le.s32.totalorder 1, %s13
      %p125 = scmp.lt.s32.totalorder %s13, 3
      %p126 = pnand %p124, %p125
      %p127 = pneg %p126
      // Predicated region
      $region25: #{tpu_custom_call.1} parent=5 // pred_check
        _
      $region26: #{tpu_custom_call.1} parent=5 // pred_check_branch
        %129 = sbr.rel (%p126) target = $region28
      $region27: #{tpu_custom_call.1} parent=5 // pred_region
        %s130 = ssub.s32 %s13, 1
        %p131 = scmp.lt.s32.totalorder %s18, 1
        %s132 = scalar_select %p131, %s18, 1
        %s133 = smul.addr %s132, 3
        %s134 = scalar_lea.vmem %s1, %s133
        %p135 = pneg %p39
        %p136 = pneg %p36
        %p137 = scmp.lt.s32.totalorder %s18, 1
        %s138 = scalar_select %p137, %s18, 1
        %s139 = smul.addr %s138, 3
        %s140 = scalar_lea.vmem %s2, %s139
        %p141 = pneg %p65
        %p142 = pneg %p62
        %p143 = pneg %p91
        %p144 = pneg %p88
        %s145 = sand.u32 %s78, 1
        %s146 = scalar_lea.sflag [#allocation5], %s145
        %s147 = sand.u32 %s78, 1
        %s148 = scalar_lea.vmem [#allocation4], %s147
        %p149 = scmp.lt.s32.totalorder %s18, 1
        %s150 = scalar_select %p149, %s18, 1
        %s151 = smul.addr %s150, 3
        %s152 = scalar_lea.vmem %s1, %s151
        %p153 = scmp.lt.s32.totalorder %s18, 1
        %s154 = scalar_select %p153, %s18, 1
        %s155 = smul.addr %s154, 3
        %s156 = scalar_lea.vmem %s2, %s155
        %s159 = sld [smem:[#allocation3]]
        %v160 = vlaneseq
        %v161 = vshrl.u32 %v160, 7
        %v162 = vadd.s32 %v161, 1
        %v163 = vlaneseq
        %v164 = vand.u32 %v163, 127
        %v165 = vadd.s32 %v164, 1
        %vm166 = vcmp.ne.s32.totalorder %v161, %v164
        %v167 = vsel %vm166, 1, 0
        %v168 = vcvt.s32.f32 %v167
        %v169 = vld [vmem:[%s152] sm:$0x7]
        %v170 = vld [vmem:[%s156] sm:$0x7]
        %172 = vst [vmem:[#allocation1] ss:$9 sm:$0xff] %v170
        %v173 = vld [vmem:[#allocation1] sm:$0xff]
        %v174 = vld [vmem:[#allocation1 + $0x9] sm:$0xff]
        %v175 = vld [vmem:[#allocation1 + $0x12] sm:$0xff]
        %v176 = vpack.i.b16 %v173, %v173
        %v177 = vperm.slane %v176, 0
        %v178 = vpack.i.b16 %v174, %v174
        %v179 = vperm.slane %v178, 0
        %v180 = vpack.i.b16 %v175, %v175
        %v181 = vperm.slane %v180, 0
        %v182 = vpack.c.b16 %v162, %v162
        %v183 = vunpack.c.l.b16 %v177
        %v184 = vunpack.c.h.b16 %v177
        %v185 = vunpack.c.l.b16 %v182
        %v186 = vunpack.c.h.b16 %v182
        %vm187 = vcmp.eq.s32.totalorder %v183, %v185
        %vm188 = vcmp.eq.s32.totalorder %v184, %v186
        %vm189 = vmpackc.low %vm188, %vm187
        %v190 = vunpack.c.l.b16 %v179
        %v191 = vunpack.c.h.b16 %v179
        %v192 = vunpack.c.l.b16 %v182
        %v193 = vunpack.c.h.b16 %v182
        %vm194 = vcmp.eq.s32.totalorder %v190, %v192
        %vm195 = vcmp.eq.s32.totalorder %v191, %v193
        %vm196 = vmpackc.low %vm195, %vm194
        %v197 = vunpack.c.l.b16 %v181
        %v198 = vunpack.c.h.b16 %v181
        %v199 = vunpack.c.l.b16 %v182
        %v200 = vunpack.c.h.b16 %v182
        %vm201 = vcmp.eq.s32.totalorder %v197, %v199
        %vm202 = vcmp.eq.s32.totalorder %v198, %v200
        %vm203 = vmpackc.low %vm202, %vm201
        %v204 = vsel %vm189, 65537, 0
        %v205 = vsel %vm196, 65537, 0
        %v206 = vsel %vm203, 65537, 0
        %v207 = vunpack.c.l.b16 %v204
        %v208 = vunpack.c.l.b16 %v205
        %v209 = vunpack.c.l.b16 %v206
        %v210 = vpack.c.b16 %v208, %v207
        %v211 = vpack.c.b16 %v209, %v209
        %v212 = vunpack.c.l.b16 %v210
        %v213 = vunpack.c.h.b16 %v210
        %v214 = vunpack.c.l.b16 0
        %v215 = vunpack.c.h.b16 0
        %vm216 = vcmp.ne.s32.totalorder %v212, %v214
        %vm217 = vcmp.ne.s32.totalorder %v213, %v215
        %vm218 = vmpackc.low %vm217, %vm216
        %v219 = vunpack.c.l.b16 %v211
        %v220 = vunpack.c.h.b16 %v211
        %v221 = vunpack.c.l.b16 0
        %v222 = vunpack.c.h.b16 0
        %vm223 = vcmp.ne.s32.totalorder %v219, %v221
        %vm224 = vcmp.ne.s32.totalorder %v220, %v222
        %vm225 = vmpackc.low %vm224, %vm223
        %v226 = vsel %vm218, 65537, 0
        %v227 = vsel %vm225, 65537, 0
        %v228 = vunpack.c.l.b16 %v226
        %v229 = vunpack.c.h.b16 %v226
        %v230 = vunpack.c.l.b16 %v227
        %vm231 = vcmp.ne.s32.totalorder %v228, 0
        %vm232 = vcmp.ne.s32.totalorder %v229, 0
        %vm233 = vcmp.ne.s32.totalorder %v230, 0
        %v234 = vsel %vm231, 1, 0
        %v235 = vsel %vm232, 1, 0
        %v236 = vsel %vm233, 1, 0
        %v237 = vcvt.s32.f32 %v234
        %v238 = vcvt.s32.f32 %v235
        %v239 = vcvt.s32.f32 %v236
        %v241 = vperm.slane %v169, 0
        %v242 = vperm.slane %v169, 1
        %v243 = vperm.slane %v169, 2
        %vm247 = vcmask 1040384
        %v248 = vsel %vm247, %v241, 1.0
        %v249 = vsel %vm247, %v242, 1.0
        %v250 = vsel %vm247, %v243, 1.0
        %251 = vmatpush.xpose.msra.mxu0 0.0
        %252 = vmatpush.xpose.msra.mxu0 0.0
        %253 = vmatpush.xpose.msra.mxu0 0.0
        %254 = vmatpush.xpose.msra.mxu0 0.0
        %255 = vmatpush.xpose.msra.mxu0 0.0
        %256 = vmatpush.xpose.msra.mxu0 0.0
        %257 = vmatpush.xpose.msra.mxu0 0.0
        %258 = vmatpush.xpose.msra.mxu0 0.0
        %259 = vmatpush.xpose.msra.mxu0 0.0
        %260 = vmatpush.xpose.msra.mxu0 0.0
        %261 = vmatpush.xpose.msra.mxu0 0.0
        %262 = vmatpush.xpose.msra.mxu0 0.0
        %263 = vmatpush.xpose.msra.mxu0 0.0
        %264 = vmatpush.xpose.msra.mxu0 0.0
        %265 = vmatpush.xpose.msra.mxu0 0.0
        %266 = vmatpush.xpose.msra.mxu0 %v248
        %267 = vmatmul.f32.gmra.mxu0 %v237
        %v268 = vpop.f32.mrf.mxu0
        %v269 = vadd.f32 0.0, %v268
        %270 = vdwg.mxu0
        %271 = vmatpush.xpose.msra.mxu0 0.0
        %272 = vmatpush.xpose.msra.mxu0 0.0
        %273 = vmatpush.xpose.msra.mxu0 0.0
        %274 = vmatpush.xpose.msra.mxu0 0.0
        %275 = vmatpush.xpose.msra.mxu0 0.0
        %276 = vmatpush.xpose.msra.mxu0 0.0
        %277 = vmatpush.xpose.msra.mxu0 0.0
        %278 = vmatpush.xpose.msra.mxu0 0.0
        %279 = vmatpush.xpose.msra.mxu0 0.0
        %280 = vmatpush.xpose.msra.mxu0 0.0
        %281 = vmatpush.xpose.msra.mxu0 0.0
        %282 = vmatpush.xpose.msra.mxu0 0.0
        %283 = vmatpush.xpose.msra.mxu0 0.0
        %284 = vmatpush.xpose.msra.mxu0 0.0
        %285 = vmatpush.xpose.msra.mxu0 0.0
        %286 = vmatpush.xpose.msra.mxu0 %v249
        %287 = vmatmul.f32.gmra.mxu0 %v238
        %v288 = vpop.f32.mrf.mxu0
        %v289 = vadd.f32 %v269, %v288
        %290 = vdwg.mxu0
        %291 = vmatpush.xpose.msra.mxu0 0.0
        %292 = vmatpush.xpose.msra.mxu0 0.0
        %293 = vmatpush.xpose.msra.mxu0 0.0
        %294 = vmatpush.xpose.msra.mxu0 0.0
        %295 = vmatpush.xpose.msra.mxu0 0.0
        %296 = vmatpush.xpose.msra.mxu0 0.0
        %297 = vmatpush.xpose.msra.mxu0 0.0
        %298 = vmatpush.xpose.msra.mxu0 0.0
        %299 = vmatpush.xpose.msra.mxu0 0.0
        %300 = vmatpush.xpose.msra.mxu0 0.0
        %301 = vmatpush.xpose.msra.mxu0 0.0
        %302 = vmatpush.xpose.msra.mxu0 0.0
        %303 = vmatpush.xpose.msra.mxu0 0.0
        %304 = vmatpush.xpose.msra.mxu0 0.0
        %305 = vmatpush.xpose.msra.mxu0 0.0
        %306 = vmatpush.xpose.msra.mxu0 %v250
        %307 = vmatmul.f32.gmra.mxu0 %v239
        %v308 = vpop.f32.mrf.mxu0
        %v309 = vadd.f32 %v289, %v308
        %310 = vdwg.mxu0
        %311 = vmatpush.xpose.msra.mxu0 0.0
        %312 = vmatpush.xpose.msra.mxu0 0.0
        %313 = vmatpush.xpose.msra.mxu0 0.0
        %314 = vmatpush.xpose.msra.mxu0 0.0
        %315 = vmatpush.xpose.msra.mxu0 0.0
        %316 = vmatpush.xpose.msra.mxu0 0.0
        %317 = vmatpush.xpose.msra.mxu0 0.0
        %318 = vmatpush.xpose.msra.mxu0 0.0
        %319 = vmatpush.xpose.msra.mxu0 0.0
        %320 = vmatpush.xpose.msra.mxu0 0.0
        %321 = vmatpush.xpose.msra.mxu0 0.0
        %322 = vmatpush.xpose.msra.mxu0 0.0
        %323 = vmatpush.xpose.msra.mxu0 0.0
        %324 = vmatpush.xpose.msra.mxu0 0.0
        %325 = vmatpush.xpose.msra.mxu0 0.0
        %326 = vmatpush.xpose.msra.mxu0 %v237
        %327 = vmatmul.f32.gmra.mxu0 %v248
        %v328 = vpop.f32.mrf.mxu0
        %v329 = vadd.f32 0.0, %v328
        %330 = vdwg.mxu0
        %331 = vmatpush.xpose.msra.mxu0 0.0
        %332 = vmatpush.xpose.msra.mxu0 0.0
        %333 = vmatpush.xpose.msra.mxu0 0.0
        %334 = vmatpush.xpose.msra.mxu0 0.0
        %335 = vmatpush.xpose.msra.mxu0 0.0
        %336 = vmatpush.xpose.msra.mxu0 0.0
        %337 = vmatpush.xpose.msra.mxu0 0.0
        %338 = vmatpush.xpose.msra.mxu0 0.0
        %339 = vmatpush.xpose.msra.mxu0 0.0
        %340 = vmatpush.xpose.msra.mxu0 0.0
        %341 = vmatpush.xpose.msra.mxu0 0.0
        %342 = vmatpush.xpose.msra.mxu0 0.0
        %343 = vmatpush.xpose.msra.mxu0 0.0
        %344 = vmatpush.xpose.msra.mxu0 0.0
        %345 = vmatpush.xpose.msra.mxu0 0.0
        %346 = vmatpush.xpose.msra.mxu0 %v238
        %347 = vmatmul.f32.gmra.mxu0 %v249
        %v348 = vpop.f32.mrf.mxu0
        %v349 = vadd.f32 %v329, %v348
        %350 = vdwg.mxu0
        %v351 = vadd.f32 %v349, 0.0
        %352 = vmatpush.xpose.msra.mxu0 0.0
        %353 = vmatpush.xpose.msra.mxu0 0.0
        %354 = vmatpush.xpose.msra.mxu0 0.0
        %355 = vmatpush.xpose.msra.mxu0 0.0
        %356 = vmatpush.xpose.msra.mxu0 0.0
        %357 = vmatpush.xpose.msra.mxu0 0.0
        %358 = vmatpush.xpose.msra.mxu0 0.0
        %359 = vmatpush.xpose.msra.mxu0 0.0
        %360 = vmatpush.xpose.msra.mxu0 0.0
        %361 = vmatpush.xpose.msra.mxu0 0.0
        %362 = vmatpush.xpose.msra.mxu0 0.0
        %363 = vmatpush.xpose.msra.mxu0 0.0
        %364 = vmatpush.xpose.msra.mxu0 0.0
        %365 = vmatpush.xpose.msra.mxu0 0.0
        %366 = vmatpush.xpose.msra.mxu0 0.0
        %367 = vmatpush.xpose.msra.mxu0 %v239
        %368 = vmatmul.f32.gmra.mxu0 %v250
        %v369 = vpop.f32.mrf.mxu0
        %v370 = vadd.f32 0.0, %v369
        %371 = vdwg.mxu0
        %v372 = vadd.f32 %v351, %v370
        %v373 = vmax.f32 %v372, 1.0
        %v375 = vrot.slane %v373, 1
        %v377 = vrcp.pop %v375
        %v378 = vmul.f32 %v375, %v377
        %v379 = vsub.f32 1.0, %v378
        %v380 = vmul.f32 %v377, %v379
        %v381 = vadd.f32 %v377, %v380
        %vm382 = vweird.f32 %v375
        %vm383 = vweird.f32 %v377
        %vm384 = vmor %vm382, %vm383
        %v385 = vsel %vm384, %v377, %v381
        %v386 = vand.u32 2147483647, %v375
        %vm387 = vcmp.eq.f32.partialorder %v386, 8.507059e+37
        %v388 = vand.u32 %v375, 2147483648
        %v389 = vor.u32 1.1754944e-38, %v388
        %v390 = vsel %vm387, %v389, %v385
        %v391 = vmul.f32 %v372, %v390
        %v392 = vmax.f32 %v309, 1.0
        %394 = vrot.lane.b32.xlu0 %v392, 127
        %v395 = vpop.permute.xlu0 %394
        %v397 = vrcp.pop %v395
        %v398 = vmul.f32 %v395, %v397
        %v399 = vsub.f32 1.0, %v398
        %v400 = vmul.f32 %v397, %v399
        %v401 = vadd.f32 %v397, %v400
        %vm402 = vweird.f32 %v395
        %vm403 = vweird.f32 %v397
        %vm404 = vmor %vm402, %vm403
        %v405 = vsel %vm404, %v397, %v401
        %v406 = vand.u32 2147483647, %v395
        %vm407 = vcmp.eq.f32.partialorder %v406, 8.507059e+37
        %v408 = vand.u32 %v395, 2147483648
        %v409 = vor.u32 1.1754944e-38, %v408
        %v410 = vsel %vm407, %v409, %v405
        %v411 = vmul.f32 %v309, %v410
        %vm412 = vcmp.gt.f32.partialorder %v372, 0.0
        %v413 = vstv %s159
        %vm414 = vcmp.le.s32.totalorder %v165, %v413
        %vm415 = vmand %vm412, %vm414
        %v416 = vsel %vm415, 1, 0
        %v417 = vcvt.s32.f32 %v416
        %vm418 = vcmp.gt.f32.partialorder %v309, 0.0
        %vm419 = vcmp.le.s32.totalorder %v162, %v413
        %vm420 = vmand %vm418, %vm419
        %v421 = vsel %vm420, 1, 0
        %v422 = vcvt.s32.f32 %v421
        %vm423 = vcmask 64512
        %v425 = vsel %vm423, %v391, 0
        %427 = vmatpush.msra.mxu0 0.0
        %428 = vmatpush.msra.mxu0 0.0
        %429 = vmatpush.msra.mxu0 0.0
        %430 = vmatpush.msra.mxu0 0.0
        %431 = vmatpush.msra.mxu0 0.0
        %432 = vmatpush.msra.mxu0 0.0
        %433 = vmatpush.msra.mxu0 0.0
        %434 = vmatpush.msra.mxu0 0.0
        %435 = vmatpush.msra.mxu0 0.0
        %436 = vmatpush.msra.mxu0 0.0
        %437 = vmatpush.msra.mxu0 0.0
        %438 = vmatpush.msra.mxu0 0.0
        %439 = vmatpush.msra.mxu0 0.0
        %440 = vmatpush.msra.mxu0 0.0
        %441 = vmatpush.msra.mxu0 0.0
        %442 = vmatpush.msra.mxu0 %v237
        %443 = vmatmul.f32.gmra.mxu0 %v425
        %v444 = vpop.f32.mrf.mxu0
        %v445 = vadd.f32 0.0, %v444
        %446 = vdwg.mxu0
        %447 = vmatpush.msra.mxu0 0.0
        %448 = vmatpush.msra.mxu0 0.0
        %449 = vmatpush.msra.mxu0 0.0
        %450 = vmatpush.msra.mxu0 0.0
        %451 = vmatpush.msra.mxu0 0.0
        %452 = vmatpush.msra.mxu0 0.0
        %453 = vmatpush.msra.mxu0 0.0
        %454 = vmatpush.msra.mxu0 0.0
        %455 = vmatpush.msra.mxu0 0.0
        %456 = vmatpush.msra.mxu0 0.0
        %457 = vmatpush.msra.mxu0 0.0
        %458 = vmatpush.msra.mxu0 0.0
        %459 = vmatpush.msra.mxu0 0.0
        %460 = vmatpush.msra.mxu0 0.0
        %461 = vmatpush.msra.mxu0 0.0
        %462 = vmatpush.msra.mxu0 %v238
        %463 = vmatmul.f32.gmra.mxu0 %v425
        %v464 = vpop.f32.mrf.mxu0
        %v465 = vadd.f32 0.0, %v464
        %466 = vdwg.mxu0
        %v469 = vrot.slane %v465, 7
        %v470 = vsel %vm247, %v445, %v469
        %v472 = vsub.f32 %v169, %v470
        %v473 = vand.u32 2147483647, %v472
        %v474 = vsub.f32 %v473, 0.5
        %v475 = vmax.f32 %v474, 0.0
        %v476 = vmul.f32 %v475, %v475
        %v478 = vperm.slane %v476, 0
        %v479 = vperm.slane %v476, 1
        %482 = vmatpush.xpose.msra.mxu0 0.0
        %483 = vmatpush.xpose.msra.mxu0 0.0
        %484 = vmatpush.xpose.msra.mxu0 0.0
        %485 = vmatpush.xpose.msra.mxu0 0.0
        %486 = vmatpush.xpose.msra.mxu0 0.0
        %487 = vmatpush.xpose.msra.mxu0 0.0
        %488 = vmatpush.xpose.msra.mxu0 0.0
        %489 = vmatpush.xpose.msra.mxu0 0.0
        %490 = vmatpush.xpose.msra.mxu0 0.0
        %491 = vmatpush.xpose.msra.mxu0 0.0
        %492 = vmatpush.xpose.msra.mxu0 0.0
        %493 = vmatpush.xpose.msra.mxu0 0.0
        %494 = vmatpush.xpose.msra.mxu0 0.0
        %495 = vmatpush.xpose.msra.mxu0 0.0
        %496 = vmatpush.xpose.msra.mxu0 0.0
        %497 = vmatpush.xpose.msra.mxu0 %v237
        %498 = vmatmul.f32.gmra.mxu0 %v478
        %v499 = vpop.f32.mrf.mxu0
        %v500 = vadd.f32 0.0, %v499
        %501 = vdwg.mxu0
        %502 = vmatpush.xpose.msra.mxu0 0.0
        %503 = vmatpush.xpose.msra.mxu0 0.0
        %504 = vmatpush.xpose.msra.mxu0 0.0
        %505 = vmatpush.xpose.msra.mxu0 0.0
        %506 = vmatpush.xpose.msra.mxu0 0.0
        %507 = vmatpush.xpose.msra.mxu0 0.0
        %508 = vmatpush.xpose.msra.mxu0 0.0
        %509 = vmatpush.xpose.msra.mxu0 0.0
        %510 = vmatpush.xpose.msra.mxu0 0.0
        %511 = vmatpush.xpose.msra.mxu0 0.0
        %512 = vmatpush.xpose.msra.mxu0 0.0
        %513 = vmatpush.xpose.msra.mxu0 0.0
        %514 = vmatpush.xpose.msra.mxu0 0.0
        %515 = vmatpush.xpose.msra.mxu0 0.0
        %516 = vmatpush.xpose.msra.mxu0 0.0
        %517 = vmatpush.xpose.msra.mxu0 %v238
        %518 = vmatmul.f32.gmra.mxu0 %v479
        %v519 = vpop.f32.mrf.mxu0
        %v520 = vadd.f32 %v500, %v519
        %521 = vdwg.mxu0
        %vm522 = vcmp.gt.f32.partialorder %v349, 0.0
        %v523 = vmax.f32 %v349, 1.0
        %v525 = vrot.slane %v523, 1
        %v527 = vrcp.pop %v525
        %v528 = vmul.f32 %v525, %v527
        %v529 = vsub.f32 1.0, %v528
        %v530 = vmul.f32 %v527, %v529
        %v531 = vadd.f32 %v527, %v530
        %vm532 = vweird.f32 %v525
        %vm533 = vweird.f32 %v527
        %vm534 = vmor %vm532, %vm533
        %v535 = vsel %vm534, %v527, %v531
        %v536 = vand.u32 2147483647, %v525
        %vm537 = vcmp.eq.f32.partialorder %v536, 8.507059e+37
        %v538 = vand.u32 %v525, 2147483648
        %v539 = vor.u32 1.1754944e-38, %v538
        %v540 = vsel %vm537, %v539, %v535
        %v541 = vmul.f32 %v520, %v540
        %v543 = vrot.slane %v541, 7
        %v545 = vsel %vm522, %v543, 0.0
        %v546 = vadd.f32 %v545, 0.0
        %547 = vmatpush.msra.mxu0 0.0
        %548 = vmatpush.msra.mxu0 0.0
        %549 = vmatpush.msra.mxu0 0.0
        %550 = vmatpush.msra.mxu0 0.0
        %551 = vmatpush.msra.mxu0 0.0
        %552 = vmatpush.msra.mxu0 0.0
        %553 = vmatpush.msra.mxu0 0.0
        %554 = vmatpush.msra.mxu0 0.0
        %555 = vmatpush.msra.mxu0 0.0
        %556 = vmatpush.msra.mxu0 0.0
        %557 = vmatpush.msra.mxu0 0.0
        %558 = vmatpush.msra.mxu0 0.0
        %559 = vmatpush.msra.mxu0 0.0
        %560 = vmatpush.msra.mxu0 0.0
        %561 = vmatpush.msra.mxu0 0.0
        %562 = vmatpush.msra.mxu0 %v239
        %563 = vmatmul.f32.gmra.mxu0 %v425
        %v564 = vpop.f32.mrf.mxu0
        %v565 = vadd.f32 0.0, %v564
        %566 = vdwg.mxu0
        %v567 = vrot.slane %v169, 2
        %v569 = vsub.f32 %v567, %v565
        %v570 = vand.u32 2147483647, %v569
        %v571 = vsub.f32 %v570, 0.5
        %v572 = vmax.f32 %v571, 0.0
        %v573 = vmul.f32 %v572, %v572
        %574 = vmatpush.xpose.msra.mxu0 0.0
        %575 = vmatpush.xpose.msra.mxu0 0.0
        %576 = vmatpush.xpose.msra.mxu0 0.0
        %577 = vmatpush.xpose.msra.mxu0 0.0
        %578 = vmatpush.xpose.msra.mxu0 0.0
        %579 = vmatpush.xpose.msra.mxu0 0.0
        %580 = vmatpush.xpose.msra.mxu0 0.0
        %581 = vmatpush.xpose.msra.mxu0 0.0
        %582 = vmatpush.xpose.msra.mxu0 0.0
        %583 = vmatpush.xpose.msra.mxu0 0.0
        %584 = vmatpush.xpose.msra.mxu0 0.0
        %585 = vmatpush.xpose.msra.mxu0 0.0
        %586 = vmatpush.xpose.msra.mxu0 0.0
        %587 = vmatpush.xpose.msra.mxu0 0.0
        %588 = vmatpush.xpose.msra.mxu0 0.0
        %589 = vmatpush.xpose.msra.mxu0 %v239
        %590 = vmatmul.f32.gmra.mxu0 %v573
        %v591 = vpop.f32.mrf.mxu0
        %v592 = vadd.f32 0.0, %v591
        %593 = vdwg.mxu0
        %vm594 = vcmp.gt.f32.partialorder %v370, 0.0
        %v595 = vmax.f32 %v370, 1.0
        %v597 = vrot.slane %v595, 1
        %v599 = vrcp.pop %v597
        %v600 = vmul.f32 %v597, %v599
        %v601 = vsub.f32 1.0, %v600
        %v602 = vmul.f32 %v599, %v601
        %v603 = vadd.f32 %v599, %v602
        %vm604 = vweird.f32 %v597
        %vm605 = vweird.f32 %v599
        %vm606 = vmor %vm604, %vm605
        %v607 = vsel %vm606, %v599, %v603
        %v608 = vand.u32 2147483647, %v597
        %vm609 = vcmp.eq.f32.partialorder %v608, 8.507059e+37
        %v610 = vand.u32 %v597, 2147483648
        %v611 = vor.u32 1.1754944e-38, %v610
        %v612 = vsel %vm609, %v611, %v607
        %v613 = vmul.f32 %v592, %v612
        %v615 = vrot.slane %v613, 7
        %v617 = vsel %vm594, %v615, 0.0
        %v618 = vadd.f32 %v546, %v617
        %v619 = vmul.f32 %v417, %v618
        %v621 = vrot.slane %v619, 1
        %vm623 = vcmask 57344
        %v624 = vsel %vm623, %v621, 0.0
        %625 = vadd.xlane.f32.xlu0 %v624
        %v626 = vpop.xlane.xlu0 %625
        %v627 = vrot.slane %v626, 4
        %v628 = vadd.f32 %v626, %v627
        %v629 = vrot.slane %v628, 2
        %v630 = vadd.f32 %v628, %v629
        %v631 = vrot.slane %v630, 1
        %v632 = vadd.f32 %v630, %v631
        %s633 = vtos %v632
        %v635 = vrot.slane %v417, 1
        %v637 = vsel %vm623, %v635, 0.0
        %638 = vadd.xlane.f32.xlu0 %v637
        %v639 = vpop.xlane.xlu0 %638
        %v640 = vrot.slane %v639, 4
        %v641 = vadd.f32 %v639, %v640
        %v642 = vrot.slane %v641, 2
        %v643 = vadd.f32 %v641, %v642
        %v644 = vrot.slane %v643, 1
        %v645 = vadd.f32 %v643, %v644
        %s646 = vtos %v645
        %648 = vset.pattern.permute.xlu0 0
        %649 = vperm.xlu0 %648, %v411
        %v650 = vpop.permute.xlu0 %649
        %v652 = vperm.slane %v391, 0
        %v653 = vsub.f32 %v650, %v652
        %v654 = vand.u32 2147483647, %v653
        %v655 = vsub.f32 6.0, %v654
        %v656 = vmax.f32 %v655, 0.0
        %v657 = vmul.f32 %v656, %v656
        %659 = vset.pattern.permute.xlu0 1
        %660 = vperm.xlu0 %659, %v422
        %v661 = vpop.permute.xlu0 %660
        %v663 = vperm.slane %v417, 1
        %v664 = vmul.f32 %v661, %v663
        %v665 = vmul.f32 %v664, %v168
        %v666 = vmul.f32 %v657, %v665
        %v667 = vsel %vm423, %v666, 0.0
        %668 = vadd.xlane.f32.xlu0 %v667
        %v669 = vpop.xlane.xlu0 %668
        %v670 = vrot.slane %v669, 4
        %v671 = vadd.f32 %v669, %v670
        %v672 = vrot.slane %v671, 2
        %v673 = vadd.f32 %v671, %v672
        %v674 = vrot.slane %v673, 1
        %v675 = vadd.f32 %v673, %v674
        %s676 = vtos %v675
        %v677 = vsel %vm423, %v665, 0.0
        %678 = vadd.xlane.f32.xlu0 %v677
        %v679 = vpop.xlane.xlu0 %678
        %v680 = vrot.slane %v679, 4
        %v681 = vadd.f32 %v679, %v680
        %v682 = vrot.slane %v681, 2
        %v683 = vadd.f32 %v681, %v682
        %v684 = vrot.slane %v683, 1
        %v685 = vadd.f32 %v683, %v684
        %s686 = vtos %v685
        %vm687 = vcmp.eq.s32.totalorder %v164, 0
        %v688 = vstv %s633
        %v689 = vsel %vm687, %v688, 0.0
        %vm690 = vcmp.eq.s32.totalorder %v164, 1
        %v691 = vstv %s646
        %v692 = vsel %vm690, %v691, 0.0
        %v693 = vadd.f32 %v689, %v692
        %vm694 = vcmp.eq.s32.totalorder %v164, 2
        %v695 = vstv %s676
        %v696 = vsel %vm694, %v695, 0.0
        %v697 = vadd.f32 %v693, %v696
        %vm698 = vcmp.eq.s32.totalorder %v164, 3
        %v699 = vstv %s686
        %v700 = vsel %vm698, %v699, 0.0
        %v701 = vadd.f32 %v697, %v700
        %702 = vst [vmem:[%s148] sm:$0x1] %v701
        %s703 = sand.u32 %s78, 1
        %s704 = scalar_lea.sflag [#allocation5], %s703
        %s705 = sand.u32 %s78, 1
        %s706 = scalar_lea.vmem [#allocation4], %s705
        // Predicated region
        $region29: #{tpu_custom_call.1} parent=27 // pred_check
          %p707 = pneg %p88
        $region30: #{tpu_custom_call.1} parent=27 // pred_check_branch
          %709 = sbr.rel (%p707) target = $region32
        $region31: #{tpu_custom_call.1} parent=27 // pred_region
          %711 = vsyncadd %s704, 0
          %s712 = scalar_lea.hbm %s3, %s18
          %s714 = sshll.u32 %s706, 4
          %s715 = int_to_ptr.vmem [resolvable:$true] %s714
          %s716 = sshll.u32 %s712, 4
          %s717 = int_to_ptr.hbm [resolvable:$true] %s716
          %719 = dma.vmem_to_hbm [thread:$0]  %s715, 16, %s717, %s704
        $region32: #{tpu_custom_call.1} parent=27 // pred_fallthru
          _
      $region28: #{tpu_custom_call.1} parent=5 // pred_fallthru
        _
      %p720 = scmp.le.s32.totalorder 2, %s13
      // Predicated region
      $region33: #{tpu_custom_call.1} parent=5 // pred_check
        %p721 = pneg %p720
      $region34: #{tpu_custom_call.1} parent=5 // pred_check_branch
        %723 = sbr.rel (%p721) target = $region36
      $region35: #{tpu_custom_call.1} parent=5 // pred_region
        %s724 = ssub.s32 %s13, 2
        // Predicated region
        $region37: #{tpu_custom_call.1} parent=35 // pred_check
          %p725 = pneg %p94
        $region38: #{tpu_custom_call.1} parent=35 // pred_check_branch
          %727 = sbr.rel (%p725) target = $region40
        $region39: #{tpu_custom_call.1} parent=35 // pred_region
          %s728 = sand.u32 %s79, 1
          %s729 = scalar_lea.sflag [#allocation5], %s728
          %s730 = sand.u32 %s79, 1
          %s731 = scalar_lea.vmem [#allocation4], %s730
          %733 = dma.done %s729, 16
        $region40: #{tpu_custom_call.1} parent=35 // pred_fallthru
          _
      $region36: #{tpu_custom_call.1} parent=5 // pred_fallthru
        _
    $region6: #{tpu_custom_call.1} parent=1 // loop_footer
      %s17 = sadd.s32 1, %s13
    $region7: #{tpu_custom_call.1} parent=1 // loop_footer_branch
      %12 = sbr.rel target = $region3
    $region8: #{tpu_custom_call.1} parent=1 // loop_exit
      _
    %734 = vsyncpa [#allocation5], 1
    %s735 = scalar_lea.sflag [#allocation5], 1
    %736 = vsyncpa %s735, 1

</llo_original>
